<compile_context>
chip_gen: v7x
topology: tpu7x:2x2x1
jax: 0.10.0
libtpu: 0.0.40
codegen_flags: <defaults>
</compile_context>

<pallas_src>
import functools

import jax
import jax.numpy as jnp
from jax.experimental import pallas as pl
from jax.experimental.pallas import tpu as pltpu


def _spatial_attn_kernel(x_ref, m_ref, o_ref, sum_ref, max_ref, *, inv_c):
    """Fused channel mean/max -> KxK conv (as matmul) -> sigmoid.

    x_ref   : (Nb, Cb, HWp)   VMEM  input block (Nb batch rows, Cb channels)
    m_ref   : (2, HWp, HWp)   VMEM  banded conv matrices (avg plane, max plane)
    o_ref   : (Nb, 1, HWp)    VMEM  output attention map (flattened spatial)
    sum_ref : (Nb, HWp)       VMEM  running channel sum (f32 scratch)
    max_ref : (Nb, HWp)       VMEM  running channel max (f32 scratch)
    """
    c_idx = pl.program_id(1)
    last_c = pl.num_programs(1) - 1

    # Block-level partial reduction over this channel chunk (sublane reduce).
    xb = x_ref[...].astype(jnp.float32)          # (Nb, Cb, HWp)
    part_sum = jnp.sum(xb, axis=1)               # (Nb, HWp)
    part_max = jnp.max(xb, axis=1)               # (Nb, HWp)

    @pl.when(c_idx == 0)
    def _():
        sum_ref[...] = part_sum
        max_ref[...] = part_max

    @pl.when(c_idx > 0)
    def _():
        sum_ref[...] = sum_ref[...] + part_sum
        max_ref[...] = jnp.maximum(max_ref[...], part_max)

    # Finalize: conv as two MXU matmuls, exact sigmoid, lane-dense store.
    @pl.when(c_idx == last_c)
    def _():
        cavg = sum_ref[...] * inv_c              # (Nb, HWp)
        cmax = max_ref[...]                      # (Nb, HWp)
        conv = (jnp.dot(cavg, m_ref[0], preferred_element_type=jnp.float32)
                + jnp.dot(cmax, m_ref[1], preferred_element_type=jnp.float32))
        sig = 0.5 * (jnp.tanh(0.5 * conv) + 1.0)  # exact sigmoid, one EUP op
        o_ref[...] = sig.reshape(o_ref.shape).astype(o_ref.dtype)


def _build_conv_matrices(conv_weight, H, W, HWp):
    """Banded matrices M[c] with out_flat = cavg @ M[0] + cmax @ M[1].

    M[c][p, q] = w[0, c, py-qy+P, px-qx+P] when the offset lies inside the
    KxK window (zero "same" padding), else 0.  Padded spatial positions
    (>= H*W) get zero rows / columns.
    """
    K = conv_weight.shape[-1]
    P = K // 2
    HW = H * W
    pos = jnp.arange(HW, dtype=jnp.int32)
    y, x = pos // W, pos % W
    dy = y[:, None] - y[None, :] + P             # (p, q) -> ky
    dx = x[:, None] - x[None, :] + P             # (p, q) -> kx
    valid = (dy >= 0) & (dy < K) & (dx >= 0) & (dx < K)
    dyc = jnp.clip(dy, 0, K - 1)
    dxc = jnp.clip(dx, 0, K - 1)
    w = conv_weight.astype(jnp.float32)          # (1, 2, K, K)
    mats = []
    for c in range(2):
        m = jnp.where(valid, w[0, c][dyc, dxc], 0.0)
        m = jnp.pad(m, ((0, HWp - HW), (0, HWp - HW)))
        mats.append(m)
    return jnp.stack(mats, axis=0)               # (2, HWp, HWp) f32


def _pick_cb(C, cb_max):
    """Channel chunk: full C if small, else the largest multiple of 8 that
    divides C (keeps the (8,128) constraint on the block's sublane dim)."""
    if C <= cb_max:
        return C
    cb = (cb_max // 8) * 8
    while cb >= 8:
        if C % cb == 0:
            return cb
        cb -= 8
    return C  # no clean divisor -> single full-channel chunk


def spatial_attention(x, conv_weight, *, nb_max=16, cb_max=16):
    """x: (N, C, H, W); conv_weight: (1, 2, K, K) -> (N, 1, H, W)."""
    N, C, H, W = x.shape
    K = conv_weight.shape[-1]
    assert conv_weight.shape == (1, 2, K, K)
    HW = H * W
    HWp = ((HW + 127) // 128) * 128              # lane-dense trailing dim

    # Batch tile: amortize per-step overhead, but keep >= 2 grid steps along
    # the 'parallel' batch axis when N > 1 so both v7x TensorCores get work.
    Nb = min(nb_max, N)
    if N > 1 and (N + Nb - 1) // Nb < 2:
        Nb = (N + 1) // 2
    Npad = ((N + Nb - 1) // Nb) * Nb

    Cb = _pick_cb(C, cb_max)
    n_c_chunks = C // Cb

    # Lane-dense layout: flatten spatial dims, pad to HWp / Npad with zeros.
    # (Keep activations in their native dtype — e.g. bf16 — to minimize HBM
    # read traffic; the kernel upcasts to f32 internally.)
    x_r = x.reshape(N, C, HW)
    if Npad != N or HWp != HW:
        x_r = jnp.pad(x_r, ((0, Npad - N), (0, 0), (0, HWp - HW)))

    conv_mats = _build_conv_matrices(conv_weight, H, W, HWp)

    kernel = functools.partial(_spatial_attn_kernel, inv_c=1.0 / C)

    # Per-step VMEM footprint estimate -> scoped limit (capped for v7x's
    # smaller physical VMEM).
    itemsize = jnp.dtype(x.dtype).itemsize
    est = (2 * Nb * Cb * HWp * itemsize          # double-buffered x block
           + 2 * 2 * HWp * HWp * 4               # conv matrices
           + 2 * Nb * HWp * itemsize             # output block
           + 2 * Nb * HWp * 4)                   # scratch accumulators
    vmem_limit = int(min(48 * 1024 * 1024, max(16 * 1024 * 1024, 2 * est)))

    out = pl.pallas_call(
        kernel,
        out_shape=jax.ShapeDtypeStruct((Npad, 1, HWp), x.dtype),
        grid_spec=pltpu.PrefetchScalarGridSpec(
            num_scalar_prefetch=0,
            grid=(Npad // Nb, n_c_chunks),
            in_specs=[
                pl.BlockSpec((Nb, Cb, HWp), lambda b, c: (b, c, 0)),
                pl.BlockSpec((2, HWp, HWp), lambda b, c: (0, 0, 0)),
            ],
            out_specs=pl.BlockSpec((Nb, 1, HWp), lambda b, c: (b, 0, 0)),
            scratch_shapes=[
                pltpu.VMEM((Nb, HWp), jnp.float32),   # running channel sum
                pltpu.VMEM((Nb, HWp), jnp.float32),   # running channel max
            ],
        ),
        compiler_params=pltpu.CompilerParams(
            dimension_semantics=("parallel", "arbitrary"),
            vmem_limit_bytes=vmem_limit,
        ),
    )(x_r, conv_mats)

    return out[:N, :, :HW].reshape(N, 1, H, W)


def _reference(x, conv_weight):
    """Pure-JAX reference mirroring the PyTorch forward."""
    avg = jnp.mean(x, axis=1, keepdims=True)
    mx = jnp.max(x, axis=1, keepdims=True)
    cat = jnp.concatenate([avg, mx], axis=1)
    K = conv_weight.shape[-1]
    P = K // 2
    y = jax.lax.conv_general_dilated(
        cat.astype(jnp.float32), conv_weight.astype(jnp.float32),
        window_strides=(1, 1), padding=((P, P), (P, P)),
        dimension_numbers=("NCHW", "OIHW", "NCHW"))
    return jax.nn.sigmoid(y)


if __name__ == "__main__":
    key = jax.random.PRNGKey(0)
    k_x, k_w = jax.random.split(key)

    N, C, H, W = 2, 4, 16, 16
    kernel_size = 7

    x = jax.random.normal(k_x, (N, C, H, W), dtype=jnp.float32)
    # Deterministic synthetic conv weight; matches nn.Conv2d(2, 1, 7, bias=False).
    conv_weight = jax.random.normal(k_w, (1, 2, kernel_size, kernel_size),
                                    dtype=jnp.float32) * 0.1

    out = spatial_attention(x, conv_weight)
    out = jax.block_until_ready(out)

    ref = _reference(x, conv_weight)
    assert out.shape == (N, 1, H, W)
    assert jnp.allclose(out, ref, atol=1e-5, rtol=1e-5), "mismatch vs reference"

    print("KERNEL_OK")
</pallas_src>

<mosaic_0001>
module attributes {stable_mosaic.version = 11 : i64} {
  func.func @_spatial_attn_kernel(%arg0: i32, %arg1: i32, %arg2: memref<1x4x256xf32, #tpu.memory_space<vmem>>, %arg3: memref<2x256x256xf32, #tpu.memory_space<vmem>>, %arg4: memref<1x1x256xf32, #tpu.memory_space<vmem>>, %arg5: memref<1x256xf32, #tpu.memory_space<vmem>>, %arg6: memref<1x256xf32, #tpu.memory_space<vmem>>) attributes {dimension_semantics = [#tpu.dimension_semantics<parallel>, #tpu.dimension_semantics<arbitrary>], iteration_bounds = array<i64: 2, 1>, scalar_prefetch = 0 : i64, scratch_operands = 2 : i64, tpu.core_type = #tpu.core_type<tc>, window_params = [{transform_indices = @transform_0, window_bounds = array<i64: 1, 4, 256>}, {pipeline_mode = #tpu.pipeline_mode<synchronous>, transform_indices = @transform_1, window_bounds = array<i64: 2, 256, 256>}, {transform_indices = @transform_2, window_bounds = array<i64: 1, 1, 256>}]} {
    %c0 = arith.constant 0 : index
    %c0_0 = arith.constant 0 : index
    %c0_1 = arith.constant 0 : index
    %0 = vector.load %arg2[%c0, %c0_0, %c0_1] : memref<1x4x256xf32, #tpu.memory_space<vmem>>, vector<1x4x256xf32>
    %cst = arith.constant dense<0.000000e+00> : vector<1x256xf32>
    %1 = vector.multi_reduction <add>, %0, %cst [1] : vector<1x4x256xf32> to vector<1x256xf32>
    %cst_2 = arith.constant dense<0xFF800000> : vector<1x256xf32>
    %2 = vector.multi_reduction <maximumf>, %0, %cst_2 [1] : vector<1x4x256xf32> to vector<1x256xf32>
    %c0_i32 = arith.constant 0 : i32
    %3 = arith.cmpi eq, %arg1, %c0_i32 : i32
    %4 = arith.extui %3 : i1 to i32
    %c0_i32_3 = arith.constant 0 : i32
    %5 = arith.cmpi ne, %4, %c0_i32_3 : i32
    scf.if %5 {
      %c0_8 = arith.constant 0 : index
      %c0_9 = arith.constant 0 : index
      %12 = vector.load %arg5[%c0_8, %c0_9] : memref<1x256xf32, #tpu.memory_space<vmem>>, vector<1x256xf32>
      tpu.vector_store %arg5[%c0_8, %c0_9], %1 {strides = array<i32>} : memref<1x256xf32, #tpu.memory_space<vmem>>, vector<1x256xf32>,
      %c0_10 = arith.constant 0 : index
      %c0_11 = arith.constant 0 : index
      %13 = vector.load %arg6[%c0_10, %c0_11] : memref<1x256xf32, #tpu.memory_space<vmem>>, vector<1x256xf32>
      tpu.vector_store %arg6[%c0_10, %c0_11], %2 {strides = array<i32>} : memref<1x256xf32, #tpu.memory_space<vmem>>, vector<1x256xf32>,
    } else {
    }
    %c0_i32_4 = arith.constant 0 : i32
    %6 = arith.cmpi sgt, %arg1, %c0_i32_4 : i32
    %7 = arith.extui %6 : i1 to i32
    %c0_i32_5 = arith.constant 0 : i32
    %8 = arith.cmpi ne, %7, %c0_i32_5 : i32
    scf.if %8 {
      %c0_8 = arith.constant 0 : index
      %c0_9 = arith.constant 0 : index
      %12 = vector.load %arg5[%c0_8, %c0_9] : memref<1x256xf32, #tpu.memory_space<vmem>>, vector<1x256xf32>
      %13 = arith.addf %12, %1 : vector<1x256xf32>
      %c0_10 = arith.constant 0 : index
      %c0_11 = arith.constant 0 : index
      %14 = vector.load %arg5[%c0_10, %c0_11] : memref<1x256xf32, #tpu.memory_space<vmem>>, vector<1x256xf32>
      tpu.vector_store %arg5[%c0_10, %c0_11], %13 {strides = array<i32>} : memref<1x256xf32, #tpu.memory_space<vmem>>, vector<1x256xf32>,
      %c0_12 = arith.constant 0 : index
      %c0_13 = arith.constant 0 : index
      %15 = vector.load %arg6[%c0_12, %c0_13] : memref<1x256xf32, #tpu.memory_space<vmem>>, vector<1x256xf32>
      %16 = arith.maximumf %15, %2 : vector<1x256xf32>
      %c0_14 = arith.constant 0 : index
      %c0_15 = arith.constant 0 : index
      %17 = vector.load %arg6[%c0_14, %c0_15] : memref<1x256xf32, #tpu.memory_space<vmem>>, vector<1x256xf32>
      tpu.vector_store %arg6[%c0_14, %c0_15], %16 {strides = array<i32>} : memref<1x256xf32, #tpu.memory_space<vmem>>, vector<1x256xf32>,
    } else {
    }
    %c0_i32_6 = arith.constant 0 : i32
    %9 = arith.cmpi eq, %arg1, %c0_i32_6 : i32
    %10 = arith.extui %9 : i1 to i32
    %c0_i32_7 = arith.constant 0 : i32
    %11 = arith.cmpi ne, %10, %c0_i32_7 : i32
    scf.if %11 {
      %c0_8 = arith.constant 0 : index
      %c0_9 = arith.constant 0 : index
      %12 = vector.load %arg5[%c0_8, %c0_9] : memref<1x256xf32, #tpu.memory_space<vmem>>, vector<1x256xf32>
      %cst_10 = arith.constant 2.500000e-01 : f32
      %13 = vector.broadcast %cst_10 : f32 to vector<1x256xf32>
      %14 = arith.mulf %12, %13 : vector<1x256xf32>
      %c0_11 = arith.constant 0 : index
      %c0_12 = arith.constant 0 : index
      %15 = vector.load %arg6[%c0_11, %c0_12] : memref<1x256xf32, #tpu.memory_space<vmem>>, vector<1x256xf32>
      %c0_13 = arith.constant 0 : index
      %c0_14 = arith.constant 0 : index
      %c0_15 = arith.constant 0 : index
      %16 = vector.load %arg3[%c0_13, %c0_14, %c0_15] : memref<2x256x256xf32, #tpu.memory_space<vmem>>, vector<1x256x256xf32>
      %17 = vector.shape_cast %16 : vector<1x256x256xf32> to vector<256x256xf32>
      %cst_16 = arith.constant dense<0.000000e+00> : vector<1x256xf32>
      %18 = tpu.matmul %14, %17, %cst_16 {dimension_numbers = #tpu.dot_dimension_numbers<[1], [0], [0], [1], [0, 0, 1, 1], [], []>} : vector<1x256xf32>, vector<256x256xf32>, vector<1x256xf32> -> vector<1x256xf32>
      %c1 = arith.constant 1 : index
      %c0_17 = arith.constant 0 : index
      %c0_18 = arith.constant 0 : index
      %19 = vector.load %arg3[%c1, %c0_17, %c0_18] : memref<2x256x256xf32, #tpu.memory_space<vmem>>, vector<1x256x256xf32>
      %20 = vector.shape_cast %19 : vector<1x256x256xf32> to vector<256x256xf32>
      %cst_19 = arith.constant dense<0.000000e+00> : vector<1x256xf32>
      %21 = tpu.matmul %15, %20, %cst_19 {dimension_numbers = #tpu.dot_dimension_numbers<[1], [0], [0], [1], [0, 0, 1, 1], [], []>} : vector<1x256xf32>, vector<256x256xf32>, vector<1x256xf32> -> vector<1x256xf32>
      %22 = arith.addf %18, %21 : vector<1x256xf32>
      %cst_20 = arith.constant 5.000000e-01 : f32
      %23 = vector.broadcast %cst_20 : f32 to vector<1x256xf32>
      %24 = arith.mulf %23, %22 : vector<1x256xf32>
      %25 = math.tanh %24 : vector<1x256xf32>
      %cst_21 = arith.constant 1.000000e+00 : f32
      %26 = vector.broadcast %cst_21 : f32 to vector<1x256xf32>
      %27 = arith.addf %25, %26 : vector<1x256xf32>
      %cst_22 = arith.constant 5.000000e-01 : f32
      %28 = vector.broadcast %cst_22 : f32 to vector<1x256xf32>
      %29 = arith.mulf %28, %27 : vector<1x256xf32>
      %30 = vector.shape_cast %29 : vector<1x256xf32> to vector<1x1x256xf32>
      %c0_23 = arith.constant 0 : index
      %c0_24 = arith.constant 0 : index
      %c0_25 = arith.constant 0 : index
      %31 = vector.load %arg4[%c0_23, %c0_24, %c0_25] : memref<1x1x256xf32, #tpu.memory_space<vmem>>, vector<1x1x256xf32>
      tpu.vector_store %arg4[%c0_23, %c0_24, %c0_25], %30 {strides = array<i32>} : memref<1x1x256xf32, #tpu.memory_space<vmem>>, vector<1x1x256xf32>,
    } else {
    }
    return
  }
  func.func @transform_0(%arg0: i32, %arg1: i32) -> (i32, i32, i32) {
    %c0_i32 = arith.constant 0 : i32
    %c0_i32_0 = arith.constant 0 : i32
    return %arg0, %arg1, %c0_i32 : i32, i32, i32
  }
  func.func @transform_1(%arg0: i32, %arg1: i32) -> (i32, i32, i32) {
    %c0_i32 = arith.constant 0 : i32
    %c0_i32_0 = arith.constant 0 : i32
    %c0_i32_1 = arith.constant 0 : i32
    %c0_i32_2 = arith.constant 0 : i32
    return %c0_i32, %c0_i32_0, %c0_i32_1 : i32, i32, i32
  }
  func.func @transform_2(%arg0: i32, %arg1: i32) -> (i32, i32, i32) {
    %c0_i32 = arith.constant 0 : i32
    %c0_i32_0 = arith.constant 0 : i32
    %c0_i32_1 = arith.constant 0 : i32
    return %arg0, %c0_i32, %c0_i32_0 : i32, i32, i32
  }
}

</mosaic_0001>

<llo_original>
// kernel: tpu_custom_call.1
$region0: #{tpu_custom_call.1}
  #allocation0 [shape = 'u32[]', space=smem, size = 0x4, offset = 0x4, fixed_abs, tag = 'smem constant byte address 0x4 - core index']
  #allocation1 [shape = 'u32[144,128]{1,0:T(1,128)}', space=vmem, size = 0x12000, scoped, tag = 'internal scratch']
  #allocation2 [shape = 'f32[1,256]{1,0:T(1,128)}', space=vmem, size = 0x400, scoped, tag = 'scratch operand']
  #allocation3 [shape = 'f32[1,256]{1,0:T(1,128)}', space=vmem, size = 0x400, scoped, tag = 'scratch operand']
  %s0 = inlined_call_operand.hbm [shape: f32[2,4,256], index: 0, kind: input, shape index: {}]
  %s1 = inlined_call_operand.hbm [shape: f32[2,256,256], index: 1, kind: input, shape index: {}]
  %s2 = inlined_call_operand.hbm [shape: f32[2,1,256], index: 2, kind: output, shape index: {}]
  %s3 = sld [smem:[#allocation0]]
  $region61: #{tpu_custom_call.1} parent=0
    _
  %s5 = ssub.s32 1, %s3
  %s6 = scalar_select 0, %s5, %s3
  $region1: #{tpu_custom_call.1} parent=0
    #allocation4 [shape = 'u8[8192]{0}', space=vmem, size = 0x2000, scoped, tag = 'input window, operand 0']
    #allocation5 [shape = 's32[2]{0}', space=sflag, size = 0x8, scoped, tag = 'scoped memory for tpu_custom_call.1']
    #allocation6 [shape = 's32[2]{0}', space=sflag, size = 0x8, scoped, tag = 'scoped memory for tpu_custom_call.1']
    #allocation7 [shape = 'u8[524288]{0}', space=vmem, size = 0x80000, scoped, tag = 'input window, operand 1, single buffered']
    #allocation8 [shape = 's32[1]{0}', space=sflag, size = 0x4, scoped, tag = 'scoped memory for tpu_custom_call.1']
    #allocation9 [shape = 'u8[2048]{0}', space=vmem, size = 0x800, scoped, tag = 'output window, operand 0']
    %7 = vsyncpa [#allocation5], 0
    %s8 = scalar_lea.sflag [#allocation5], 1
    %9 = vsyncpa %s8, 0
    %10 = vsyncpa [#allocation8], 0
    %11 = vsyncpa [#allocation6], 0
    %s12 = scalar_lea.sflag [#allocation6], 1
    %13 = vsyncpa %s12, 0
    loop: start=0, step=1, limit=4
    $region2: #{tpu_custom_call.1} parent=1 // loop_pre_header
      _
    $region3: #{tpu_custom_call.1} parent=1 // loop_header
      %s15 = sphi 0, %s19
      %p16 = scmp.ge.s32.totalorder %s15, 4
      %s22 = sphi 0, %s34
      %s23 = sphi 0, %s30
      %s24 = sphi 0, %s22
      %s25 = sphi 0, %s23
      %s26 = sphi 0, %s24
      %s27 = sphi 0, %s25
      %s39 = sphi 0, %s41
      %s42 = sphi 0, %s39
      %s43 = sphi 0, %s42
      %s59 = sphi 0, %s43
      %s63 = sphi 0, %s63
      %s65 = sphi 0, %s63
      %s66 = sphi 0, %s65
      %s80 = sphi 0, %s66
      %s86 = sphi 0, %s88
      %s89 = sphi 0, %s86
      %s90 = sphi 0, %s89
      %s106 = sphi 0, %s90
    $region4: #{tpu_custom_call.1} parent=1 // loop_header_branch
      %18 = sbr.rel (%p16) target = $region8
    $region5: #{tpu_custom_call.1} parent=1 // loop_body
      %s20 = ssub.s32 %s15, 1
      %s21 = ssub.s32 %s15, 2
      %s28 = sadd.s32 1, %s23
      %p29 = scmp.ge.s32.totalorder %s28, 1
      %s30 = scalar_select %p29, 0, %s28
      %s31 = sadd.s32 1, %s22
      %s32 = scalar_select %p29, %s31, %s22
      %p33 = scmp.ge.s32.totalorder %s32, 2
      %s34 = scalar_select %p33, 0, %s32
      %s35 = ssub.s32 %s22, %s34
      %s36 = ssub.s32 %s23, %s30
      %s37 = sor.u32 %s35, %s36
      %p38 = scmp.eq.s32.totalorder %s37, 0
      %s40 = sadd.s32 %s39, 1
      %s41 = scalar_select %p38, %s39, %s40
      %p44 = pneg %p38
      %p45 = scmp.eq.s32.totalorder %s15, 1
      %p46 = por %p44, %p45
      %p47 = scmp.ne.s32.totalorder %s39, %s42
      %p48 = scmp.eq.s32.totalorder %s15, 0
      %p49 = por %p47, %p48
      %p50 = scmp.ne.s32.totalorder %s39, %s42
      %p51 = scmp.eq.s32.totalorder %s20, 1
      %p52 = por %p50, %p51
      %p53 = scmp.ne.s32.totalorder %s42, %s43
      %p54 = scmp.eq.s32.totalorder %s20, 0
      %p55 = por %p53, %p54
      %p56 = scmp.ne.s32.totalorder %s42, %s43
      %p57 = scmp.eq.s32.totalorder %s21, 1
      %p58 = por %p56, %p57
      %p60 = scmp.ne.s32.totalorder %s43, %s59
      %p61 = scmp.eq.s32.totalorder %s21, 0
      %p62 = por %p60, %p61
      %s64 = sadd.s32 %s63, 1
      %p67 = scmp.eq.s32.totalorder %s15, 1
      %p68 = scmp.ne.s32.totalorder %s63, %s65
      %p69 = scmp.eq.s32.totalorder %s15, 0
      %p70 = por %p68, %p69
      %p71 = scmp.ne.s32.totalorder %s63, %s65
      %p72 = scmp.eq.s32.totalorder %s20, 1
      %p73 = por %p71, %p72
      %p74 = scmp.ne.s32.totalorder %s65, %s66
      %p75 = scmp.eq.s32.totalorder %s20, 0
      %p76 = por %p74, %p75
      %p77 = scmp.ne.s32.totalorder %s65, %s66
      %p78 = scmp.eq.s32.totalorder %s21, 1
      %p79 = por %p77, %p78
      %p81 = scmp.ne.s32.totalorder %s66, %s80
      %p82 = scmp.eq.s32.totalorder %s21, 0
      %p83 = por %p81, %p82
      %s84 = ssub.s32 %s22, %s34
      %p85 = scmp.eq.s32.totalorder %s84, 0
      %s87 = sadd.s32 %s86, 1
      %s88 = scalar_select %p85, %s86, %s87
      %p91 = pneg %p85
      %p92 = scmp.eq.s32.totalorder %s15, 1
      %p93 = por %p91, %p92
      %p94 = scmp.ne.s32.totalorder %s86, %s89
      %p95 = scmp.eq.s32.totalorder %s15, 0
      %p96 = por %p94, %p95
      %p97 = scmp.ne.s32.totalorder %s86, %s89
      %p98 = scmp.eq.s32.totalorder %s20, 1
      %p99 = por %p97, %p98
      %p100 = scmp.ne.s32.totalorder %s89, %s90
      %p101 = scmp.eq.s32.totalorder %s20, 0
      %p102 = por %p100, %p101
      %p103 = scmp.ne.s32.totalorder %s89, %s90
      %p104 = scmp.eq.s32.totalorder %s21, 1
      %p105 = por %p103, %p104
      %p107 = scmp.ne.s32.totalorder %s90, %s106
      %p108 = scmp.eq.s32.totalorder %s21, 0
      %p109 = por %p107, %p108
      %p110 = scmp.le.s32.totalorder 1, %s15
      %p111 = scmp.lt.s32.totalorder %s15, 3
      %p112 = pnand %p110, %p111
      %p113 = pneg %p112
      // Predicated region
      $region9: #{tpu_custom_call.1} parent=5 // pred_check
        _
      $region10: #{tpu_custom_call.1} parent=5 // pred_check_branch
        %115 = sbr.rel (%p112) target = $region12
      $region11: #{tpu_custom_call.1} parent=5 // pred_region
        %s116 = ssub.s32 %s15, 1
        // Predicated region
        $region13: #{tpu_custom_call.1} parent=11 // pred_check
          %p117 = pneg %p76
        $region14: #{tpu_custom_call.1} parent=11 // pred_check_branch
          %119 = sbr.rel (%p117) target = $region16
        $region15: #{tpu_custom_call.1} parent=11 // pred_region
          %s121 = ssub.s32 16384, 16384
          %122 = vsyncadd [#allocation8], %s121
          %s123 = sshll.u32 [#allocation7], 4
          %s124 = int_to_ptr.vmem [resolvable:$true] %s123
          %129 = dma.hbm_to_vmem [thread:$0]  %s1, 16384, %s124, [#allocation8], 256, 256, 16
        $region16: #{tpu_custom_call.1} parent=11 // pred_fallthru
          _
      $region12: #{tpu_custom_call.1} parent=5 // pred_fallthru
        _
      %p130 = scmp.lt.s32.totalorder %s15, 2
      // Predicated region
      $region17: #{tpu_custom_call.1} parent=5 // pred_check
        %p131 = pneg %p130
      $region18: #{tpu_custom_call.1} parent=5 // pred_check_branch
        %133 = sbr.rel (%p131) target = $region20
      $region19: #{tpu_custom_call.1} parent=5 // pred_region
        // Predicated region
        $region21: #{tpu_custom_call.1} parent=19 // pred_check
          %p134 = pneg %p49
        $region22: #{tpu_custom_call.1} parent=19 // pred_check_branch
          %136 = sbr.rel (%p134) target = $region24
        $region23: #{tpu_custom_call.1} parent=19 // pred_region
          %s137 = sand.u32 %s39, 1
          %s138 = scalar_lea.sflag [#allocation5], %s137
          %s139 = sand.u32 %s39, 1
          %s140 = smul.addr %s139, 8
          %s141 = scalar_lea.vmem [#allocation4], %s140
          %s143 = ssub.s32 128, 128
          %144 = vsyncadd %s138, %s143
          %s145 = smul.addr %s23, 2
          %s146 = smul.addr %s22, 2
          %s147 = sadd.s32 %s145, %s146
          %s148 = smul.addr %s147, 64
          %s149 = scalar_lea.hbm %s0, %s148
          %s151 = sshll.u32 %s141, 4
          %s152 = int_to_ptr.vmem [resolvable:$true] %s151
          %154 = dma.hbm_to_vmem [thread:$0]  %s149, 128, %s152, %s138
        $region24: #{tpu_custom_call.1} parent=19 // pred_fallthru
          _
      $region20: #{tpu_custom_call.1} parent=5 // pred_fallthru
        _
      %p155 = scmp.le.s32.totalorder 1, %s15
      %p156 = scmp.lt.s32.totalorder %s15, 3
      %p157 = pnand %p155, %p156
      %p158 = pneg %p157
      // Predicated region
      $region25: #{tpu_custom_call.1} parent=5 // pred_check
        _
      $region26: #{tpu_custom_call.1} parent=5 // pred_check_branch
        %160 = sbr.rel (%p157) target = $region28
      $region27: #{tpu_custom_call.1} parent=5 // pred_region
        %s161 = ssub.s32 %s15, 1
        %s162 = sand.u32 %s42, 1
        %s163 = scalar_lea.sflag [#allocation5], %s162
        %s164 = sand.u32 %s42, 1
        %s165 = smul.addr %s164, 8
        %s166 = scalar_lea.vmem [#allocation4], %s165
        // Predicated region
        $region29: #{tpu_custom_call.1} parent=27 // pred_check
          %p167 = pneg %p55
        $region30: #{tpu_custom_call.1} parent=27 // pred_check_branch
          %169 = sbr.rel (%p167) target = $region32
        $region31: #{tpu_custom_call.1} parent=27 // pred_region
          %170 = dma.done %s163, 128
        $region32: #{tpu_custom_call.1} parent=27 // pred_fallthru
          _
        // Predicated region
        $region33: #{tpu_custom_call.1} parent=27 // pred_check
          %p171 = pneg %p76
        $region34: #{tpu_custom_call.1} parent=27 // pred_check_branch
          %173 = sbr.rel (%p171) target = $region36
        $region35: #{tpu_custom_call.1} parent=27 // pred_region
          %174 = dma.done [#allocation8], 16384
        $region36: #{tpu_custom_call.1} parent=27 // pred_fallthru
          _
        %s175 = sand.u32 %s42, 1
        %s176 = scalar_lea.sflag [#allocation5], %s175
        %s177 = sand.u32 %s42, 1
        %s178 = smul.addr %s177, 8
        %s179 = scalar_lea.vmem [#allocation4], %s178
        %p180 = pneg %p55
        %p181 = pneg %p52
        %p182 = pneg %p76
        %p183 = pneg %p73
        %p184 = pneg %p102
        %p185 = pneg %p99
        %s186 = sand.u32 %s89, 1
        %s187 = scalar_lea.sflag [#allocation6], %s186
        %s188 = sand.u32 %s89, 1
        %s189 = smul.addr %s188, 2
        %s190 = scalar_lea.vmem [#allocation9], %s189
        %v191 = vld [vmem:[%s166] sm:$0xff]
        %v193 = vcombine.high %v191, %v191
        %vm195 = vcmask 1043456
        %v196 = vsel %vm195, %v191, 0.0
        %v197 = vrot.slane %v196, 4
        %v198 = vadd.f32 %v196, %v197
        %v199 = vrot.slane %v198, 2
        %v200 = vadd.f32 %v198, %v199
        %v201 = vrot.slane %v200, 1
        %v202 = vadd.f32 %v200, %v201
        %v203 = vsel %vm195, %v193, 0.0
        %v204 = vrot.slane %v203, 4
        %v205 = vadd.f32 %v203, %v204
        %v206 = vrot.slane %v205, 2
        %v207 = vadd.f32 %v205, %v206
        %v208 = vrot.slane %v207, 1
        %v209 = vadd.f32 %v207, %v208
        %v210 = vsel %vm195, %v191, -inf
        %v211 = vrot.slane %v210, 4
        %v212 = vmax.f32 %v210, %v211
        %v213 = vrot.slane %v212, 2
        %v214 = vmax.f32 %v212, %v213
        %v215 = vrot.slane %v214, 1
        %v216 = vmax.f32 %v214, %v215
        %v217 = vsel %vm195, %v193, -inf
        %v218 = vrot.slane %v217, 4
        %v219 = vmax.f32 %v217, %v218
        %v220 = vrot.slane %v219, 2
        %v221 = vmax.f32 %v219, %v220
        %v222 = vrot.slane %v221, 1
        %v223 = vmax.f32 %v221, %v222
        %p224 = scmp.eq.s32.totalorder %s25, 0
        // Predicated region
        $region37: #{tpu_custom_call.1} parent=27 // pred_check
          %p225 = pneg %p224
        $region38: #{tpu_custom_call.1} parent=27 // pred_check_branch
          %227 = sbr.rel (%p225) target = $region40
        $region39: #{tpu_custom_call.1} parent=27 // pred_region
          %v230 = vcombine.low %v202, %v209
          %v232 = vunpack.c.l.s4 1966171168
          %v233 = vunpack.c.0.s8 %v232
          %v234 = vlaneseq
          %v235 = vshrl.u32 %v234, 7
          %v236 = vsub.s32 %v233, %v235
          %v237 = vrot.slane %v230, %v236
          %v239 = vunpack.c.l.s4 1966171168
          %v240 = vunpack.c.0.s8 %v239
          %v241 = vlaneseq
          %v242 = vshrl.u32 %v241, 7
          %v243 = vsub.s32 %v240, %v242
          %v244 = vrot.slane %v237, %v243
          %v246 = vlaneseq
          %vm247 = vcmp.ge.s32.totalorder %v246, 0
          %vm248 = vcmp.lt.s32.totalorder %v246, 256
          %vm249 = vmand %vm247, %vm248
          %250 = vst.msk [vmem:[#allocation2] sm:$0x3] %vm249, %v244
          %v253 = vcombine.low %v216, %v223
          %v255 = vunpack.c.l.s4 1966171168
          %v256 = vunpack.c.0.s8 %v255
          %v257 = vlaneseq
          %v258 = vshrl.u32 %v257, 7
          %v259 = vsub.s32 %v256, %v258
          %v260 = vrot.slane %v253, %v259
          %v262 = vunpack.c.l.s4 1966171168
          %v263 = vunpack.c.0.s8 %v262
          %v264 = vlaneseq
          %v265 = vshrl.u32 %v264, 7
          %v266 = vsub.s32 %v263, %v265
          %v267 = vrot.slane %v260, %v266
          %269 = vst.msk [vmem:[#allocation3] sm:$0x3] %vm249, %v267
        $region40: #{tpu_custom_call.1} parent=27 // pred_fallthru
          _
        %p270 = scmp.gt.s32.totalorder %s25, 0
        // Predicated region
        $region41: #{tpu_custom_call.1} parent=27 // pred_check
          %p271 = pneg %p270
        $region42: #{tpu_custom_call.1} parent=27 // pred_check_branch
          %273 = sbr.rel (%p271) target = $region44
        $region43: #{tpu_custom_call.1} parent=27 // pred_region
          %v274 = vld [vmem:[#allocation2] sm:$0x3]
          %v277 = vcombine.low %v202, %v209
          %v279 = vunpack.c.l.s4 1966171168
          %v280 = vunpack.c.0.s8 %v279
          %v281 = vlaneseq
          %v282 = vshrl.u32 %v281, 7
          %v283 = vsub.s32 %v280, %v282
          %v284 = vrot.slane %v277, %v283
          %v286 = vunpack.c.l.s4 1966171168
          %v287 = vunpack.c.0.s8 %v286
          %v288 = vlaneseq
          %v289 = vshrl.u32 %v288, 7
          %v290 = vsub.s32 %v287, %v289
          %v291 = vrot.slane %v284, %v290
          %v293 = vadd.f32 %v274, %v291
          %v294 = vlaneseq
          %vm295 = vcmp.ge.s32.totalorder %v294, 0
          %vm296 = vcmp.lt.s32.totalorder %v294, 256
          %vm297 = vmand %vm295, %vm296
          %298 = vst.msk [vmem:[#allocation2] sm:$0x3] %vm297, %v293
          %v299 = vld [vmem:[#allocation3] sm:$0x3]
          %v302 = vcombine.low %v216, %v223
          %v304 = vunpack.c.l.s4 1966171168
          %v305 = vunpack.c.0.s8 %v304
          %v306 = vlaneseq
          %v307 = vshrl.u32 %v306, 7
          %v308 = vsub.s32 %v305, %v307
          %v309 = vrot.slane %v302, %v308
          %v311 = vunpack.c.l.s4 1966171168
          %v312 = vunpack.c.0.s8 %v311
          %v313 = vlaneseq
          %v314 = vshrl.u32 %v313, 7
          %v315 = vsub.s32 %v312, %v314
          %v316 = vrot.slane %v309, %v315
          %v318 = vmax.f32 %v299, %v316
          %319 = vst.msk [vmem:[#allocation3] sm:$0x3] %vm297, %v318
        $region44: #{tpu_custom_call.1} parent=27 // pred_fallthru
          _
        // Predicated region
        $region45: #{tpu_custom_call.1} parent=27 // pred_check
          %p320 = pneg %p224
        $region46: #{tpu_custom_call.1} parent=27 // pred_check_branch
          %322 = sbr.rel (%p320) target = $region48
        $region47: #{tpu_custom_call.1} parent=27 // pred_region
          %v323 = vld [vmem:[#allocation2] sm:$0x3]
          %v324 = vmul.f32 %v323, 0.25
          %v325 = vld [vmem:[#allocation3] sm:$0x3]
          %v326 = vld [vmem:[#allocation7] sm:$0xff]
          %v327 = vld [vmem:[#allocation7 + $0x8] sm:$0xff]
          %v328 = vld [vmem:[#allocation7 + $0x10] sm:$0xff]
          %v329 = vld [vmem:[#allocation7 + $0x18] sm:$0xff]
          %v330 = vld [vmem:[#allocation7 + $0x20] sm:$0xff]
          %v331 = vld [vmem:[#allocation7 + $0x28] sm:$0xff]
          %v332 = vld [vmem:[#allocation7 + $0x30] sm:$0xff]
          %v333 = vld [vmem:[#allocation7 + $0x38] sm:$0xff]
          %v334 = vld [vmem:[#allocation7 + $0x40] sm:$0xff]
          %v335 = vld [vmem:[#allocation7 + $0x48] sm:$0xff]
          %v336 = vld [vmem:[#allocation7 + $0x50] sm:$0xff]
          %v337 = vld [vmem:[#allocation7 + $0x58] sm:$0xff]
          %v338 = vld [vmem:[#allocation7 + $0x60] sm:$0xff]
          %v339 = vld [vmem:[#allocation7 + $0x68] sm:$0xff]
          %v340 = vld [vmem:[#allocation7 + $0x70] sm:$0xff]
          %v341 = vld [vmem:[#allocation7 + $0x78] sm:$0xff]
          %v342 = vld [vmem:[#allocation7 + $0x80] sm:$0xff]
          %v343 = vld [vmem:[#allocation7 + $0x88] sm:$0xff]
          %v344 = vld [vmem:[#allocation7 + $0x90] sm:$0xff]
          %v345 = vld [vmem:[#allocation7 + $0x98] sm:$0xff]
          %v346 = vld [vmem:[#allocation7 + $0xa0] sm:$0xff]
          %v347 = vld [vmem:[#allocation7 + $0xa8] sm:$0xff]
          %v348 = vld [vmem:[#allocation7 + $0xb0] sm:$0xff]
          %v349 = vld [vmem:[#allocation7 + $0xb8] sm:$0xff]
          %v350 = vld [vmem:[#allocation7 + $0xc0] sm:$0xff]
          %v351 = vld [vmem:[#allocation7 + $0xc8] sm:$0xff]
          %v352 = vld [vmem:[#allocation7 + $0xd0] sm:$0xff]
          %v353 = vld [vmem:[#allocation7 + $0xd8] sm:$0xff]
          %v354 = vld [vmem:[#allocation7 + $0xe0] sm:$0xff]
          %v355 = vld [vmem:[#allocation7 + $0xe8] sm:$0xff]
          %v356 = vld [vmem:[#allocation7 + $0xf0] sm:$0xff]
          %v357 = vld [vmem:[#allocation7 + $0xf8] sm:$0xff]
          %v358 = vld [vmem:[#allocation7 + $0x100] sm:$0xff]
          %v359 = vld [vmem:[#allocation7 + $0x108] sm:$0xff]
          %v360 = vld [vmem:[#allocation7 + $0x110] sm:$0xff]
          %v361 = vld [vmem:[#allocation7 + $0x118] sm:$0xff]
          %v362 = vld [vmem:[#allocation7 + $0x120] sm:$0xff]
          %v363 = vld [vmem:[#allocation7 + $0x128] sm:$0xff]
          %v364 = vld [vmem:[#allocation7 + $0x130] sm:$0xff]
          %v365 = vld [vmem:[#allocation7 + $0x138] sm:$0xff]
          %v366 = vld [vmem:[#allocation7 + $0x140] sm:$0xff]
          %v367 = vld [vmem:[#allocation7 + $0x148] sm:$0xff]
          %v368 = vld [vmem:[#allocation7 + $0x150] sm:$0xff]
          %v369 = vld [vmem:[#allocation7 + $0x158] sm:$0xff]
          %v370 = vld [vmem:[#allocation7 + $0x160] sm:$0xff]
          %v371 = vld [vmem:[#allocation7 + $0x168] sm:$0xff]
          %v372 = vld [vmem:[#allocation7 + $0x170] sm:$0xff]
          %v373 = vld [vmem:[#allocation7 + $0x178] sm:$0xff]
          %v374 = vld [vmem:[#allocation7 + $0x180] sm:$0xff]
          %v375 = vld [vmem:[#allocation7 + $0x188] sm:$0xff]
          %v376 = vld [vmem:[#allocation7 + $0x190] sm:$0xff]
          %v377 = vld [vmem:[#allocation7 + $0x198] sm:$0xff]
          %v378 = vld [vmem:[#allocation7 + $0x1a0] sm:$0xff]
          %v379 = vld [vmem:[#allocation7 + $0x1a8] sm:$0xff]
          %v380 = vld [vmem:[#allocation7 + $0x1b0] sm:$0xff]
          %v381 = vld [vmem:[#allocation7 + $0x1b8] sm:$0xff]
          %v382 = vld [vmem:[#allocation7 + $0x1c0] sm:$0xff]
          %v383 = vld [vmem:[#allocation7 + $0x1c8] sm:$0xff]
          %v384 = vld [vmem:[#allocation7 + $0x1d0] sm:$0xff]
          %v385 = vld [vmem:[#allocation7 + $0x1d8] sm:$0xff]
          %v386 = vld [vmem:[#allocation7 + $0x1e0] sm:$0xff]
          %v387 = vld [vmem:[#allocation7 + $0x1e8] sm:$0xff]
          %v388 = vld [vmem:[#allocation7 + $0x1f0] sm:$0xff]
          %v389 = vld [vmem:[#allocation7 + $0x1f8] sm:$0xff]
          %s390 = scalar_lea.vmem [#allocation7], 512
          %v391 = vld [vmem:[%s390] sm:$0xff]
          %v392 = vld [vmem:[%s390 + $0x8] sm:$0xff]
          %v393 = vld [vmem:[%s390 + $0x10] sm:$0xff]
          %v394 = vld [vmem:[%s390 + $0x18] sm:$0xff]
          %v395 = vld [vmem:[%s390 + $0x20] sm:$0xff]
          %v396 = vld [vmem:[%s390 + $0x28] sm:$0xff]
          %v397 = vld [vmem:[%s390 + $0x30] sm:$0xff]
          %v398 = vld [vmem:[%s390 + $0x38] sm:$0xff]
          %v399 = vld [vmem:[%s390 + $0x40] sm:$0xff]
          %v400 = vld [vmem:[%s390 + $0x48] sm:$0xff]
          %v401 = vld [vmem:[%s390 + $0x50] sm:$0xff]
          %v402 = vld [vmem:[%s390 + $0x58] sm:$0xff]
          %v403 = vld [vmem:[%s390 + $0x60] sm:$0xff]
          %v404 = vld [vmem:[%s390 + $0x68] sm:$0xff]
          %v405 = vld [vmem:[%s390 + $0x70] sm:$0xff]
          %v406 = vld [vmem:[%s390 + $0x78] sm:$0xff]
          %v407 = vld [vmem:[%s390 + $0x80] sm:$0xff]
          %v408 = vld [vmem:[%s390 + $0x88] sm:$0xff]
          %v409 = vld [vmem:[%s390 + $0x90] sm:$0xff]
          %v410 = vld [vmem:[%s390 + $0x98] sm:$0xff]
          %v411 = vld [vmem:[%s390 + $0xa0] sm:$0xff]
          %v412 = vld [vmem:[%s390 + $0xa8] sm:$0xff]
          %v413 = vld [vmem:[%s390 + $0xb0] sm:$0xff]
          %v414 = vld [vmem:[%s390 + $0xb8] sm:$0xff]
          %v415 = vld [vmem:[%s390 + $0xc0] sm:$0xff]
          %v416 = vld [vmem:[%s390 + $0xc8] sm:$0xff]
          %v417 = vld [vmem:[%s390 + $0xd0] sm:$0xff]
          %v418 = vld [vmem:[%s390 + $0xd8] sm:$0xff]
          %v419 = vld [vmem:[%s390 + $0xe0] sm:$0xff]
          %v420 = vld [vmem:[%s390 + $0xe8] sm:$0xff]
          %v421 = vld [vmem:[%s390 + $0xf0] sm:$0xff]
          %v422 = vld [vmem:[%s390 + $0xf8] sm:$0xff]
          %v423 = vld [vmem:[%s390 + $0x100] sm:$0xff]
          %v424 = vld [vmem:[%s390 + $0x108] sm:$0xff]
          %v425 = vld [vmem:[%s390 + $0x110] sm:$0xff]
          %v426 = vld [vmem:[%s390 + $0x118] sm:$0xff]
          %v427 = vld [vmem:[%s390 + $0x120] sm:$0xff]
          %v428 = vld [vmem:[%s390 + $0x128] sm:$0xff]
          %v429 = vld [vmem:[%s390 + $0x130] sm:$0xff]
          %v430 = vld [vmem:[%s390 + $0x138] sm:$0xff]
          %v431 = vld [vmem:[%s390 + $0x140] sm:$0xff]
          %v432 = vld [vmem:[%s390 + $0x148] sm:$0xff]
          %v433 = vld [vmem:[%s390 + $0x150] sm:$0xff]
          %v434 = vld [vmem:[%s390 + $0x158] sm:$0xff]
          %v435 = vld [vmem:[%s390 + $0x160] sm:$0xff]
          %v436 = vld [vmem:[%s390 + $0x168] sm:$0xff]
          %v437 = vld [vmem:[%s390 + $0x170] sm:$0xff]
          %v438 = vld [vmem:[%s390 + $0x178] sm:$0xff]
          %v439 = vld [vmem:[%s390 + $0x180] sm:$0xff]
          %v440 = vld [vmem:[%s390 + $0x188] sm:$0xff]
          %v441 = vld [vmem:[%s390 + $0x190] sm:$0xff]
          %v442 = vld [vmem:[%s390 + $0x198] sm:$0xff]
          %v443 = vld [vmem:[%s390 + $0x1a0] sm:$0xff]
          %v444 = vld [vmem:[%s390 + $0x1a8] sm:$0xff]
          %v445 = vld [vmem:[%s390 + $0x1b0] sm:$0xff]
          %v446 = vld [vmem:[%s390 + $0x1b8] sm:$0xff]
          %v447 = vld [vmem:[%s390 + $0x1c0] sm:$0xff]
          %v448 = vld [vmem:[%s390 + $0x1c8] sm:$0xff]
          %v449 = vld [vmem:[%s390 + $0x1d0] sm:$0xff]
          %v450 = vld [vmem:[%s390 + $0x1d8] sm:$0xff]
          %v451 = vld [vmem:[%s390 + $0x1e0] sm:$0xff]
          %v452 = vld [vmem:[%s390 + $0x1e8] sm:$0xff]
          %v453 = vld [vmem:[%s390 + $0x1f0] sm:$0xff]
          %v454 = vld [vmem:[%s390 + $0x1f8] sm:$0xff]
          %v456 = vlaneseq
          %v457 = vshrl.u32 %v456, 7
          %v458 = vsub.s32 0, %v457
          %v459 = vrot.slane %v325, %v458
          %v460 = vlaneseq
          %v461 = vshrl.u32 %v460, 7
          %v462 = vsub.s32 1, %v461
          %v463 = vrot.slane %v325, %v462
          %466 = vmatprep.subr.mxu0 %v392
          %467 = vmatpush1.msra.mxu0 %v391
          %468 = vmatprep.subr.mxu0 %v394
          %469 = vmatpush1.msra.mxu0 %v393
          %470 = vmatprep.subr.mxu0 %v396
          %471 = vmatpush1.msra.mxu0 %v395
          %472 = vmatprep.subr.mxu0 %v398
          %473 = vmatpush1.msra.mxu0 %v397
          %474 = vmatprep.subr.mxu0 %v400
          %475 = vmatpush1.msra.mxu0 %v399
          %476 = vmatprep.subr.mxu0 %v402
          %477 = vmatpush1.msra.mxu0 %v401
          %478 = vmatprep.subr.mxu0 %v404
          %479 = vmatpush1.msra.mxu0 %v403
          %480 = vmatprep.subr.mxu0 %v406
          %481 = vmatpush1.msra.mxu0 %v405
          %482 = vmatprep.subr.mxu0 %v408
          %483 = vmatpush1.msra.mxu0 %v407
          %484 = vmatprep.subr.mxu0 %v410
          %485 = vmatpush1.msra.mxu0 %v409
          %486 = vmatprep.subr.mxu0 %v412
          %487 = vmatpush1.msra.mxu0 %v411
          %488 = vmatprep.subr.mxu0 %v414
          %489 = vmatpush1.msra.mxu0 %v413
          %490 = vmatprep.subr.mxu0 %v416
          %491 = vmatpush1.msra.mxu0 %v415
          %492 = vmatprep.subr.mxu0 %v418
          %493 = vmatpush1.msra.mxu0 %v417
          %494 = vmatprep.subr.mxu0 %v420
          %495 = vmatpush1.msra.mxu0 %v419
          %496 = vmatprep.subr.mxu0 %v422
          %497 = vmatpush1.msra.mxu0 %v421
          %498 = vmatprep.subr.mxu0 %v424
          %499 = vmatpush1.msra.mxu0 %v423
          %500 = vmatprep.subr.mxu0 %v426
          %501 = vmatpush1.msra.mxu0 %v425
          %502 = vmatprep.subr.mxu0 %v428
          %503 = vmatpush1.msra.mxu0 %v427
          %504 = vmatprep.subr.mxu0 %v430
          %505 = vmatpush1.msra.mxu0 %v429
          %506 = vmatprep.subr.mxu0 %v432
          %507 = vmatpush1.msra.mxu0 %v431
          %508 = vmatprep.subr.mxu0 %v434
          %509 = vmatpush1.msra.mxu0 %v433
          %510 = vmatprep.subr.mxu0 %v436
          %511 = vmatpush1.msra.mxu0 %v435
          %512 = vmatprep.subr.mxu0 %v438
          %513 = vmatpush1.msra.mxu0 %v437
          %514 = vmatprep.subr.mxu0 %v440
          %515 = vmatpush1.msra.mxu0 %v439
          %516 = vmatprep.subr.mxu0 %v442
          %517 = vmatpush1.msra.mxu0 %v441
          %518 = vmatprep.subr.mxu0 %v444
          %519 = vmatpush1.msra.mxu0 %v443
          %520 = vmatprep.subr.mxu0 %v446
          %521 = vmatpush1.msra.mxu0 %v445
          %522 = vmatprep.subr.mxu0 %v448
          %523 = vmatpush1.msra.mxu0 %v447
          %524 = vmatprep.subr.mxu0 %v450
          %525 = vmatpush1.msra.mxu0 %v449
          %526 = vmatprep.subr.mxu0 %v452
          %527 = vmatpush1.msra.mxu0 %v451
          %528 = vmatprep.subr.mxu0 %v454
          %529 = vmatpush1.msra.mxu0 %v453
          %530 = vmatprep.mubr.f32.mxu0 %v463
          %531 = vmatmul.mubr.f32.gmra.mrb[0].mxu0 %v459
          %v532 = vpop.f32.mrb[0].mxu0
          %v533 = vadd.f32 0.0, %v532
          %v534 = vpop.f32.mrb[0].mxu0
          %v535 = vadd.f32 0.0, %v534
          %536 = vdwg.mxu0
          %v538 = vlaneseq
          %v539 = vshrl.u32 %v538, 7
          %v540 = vsub.s32 0, %v539
          %v541 = vrot.slane %v324, %v540
          %v542 = vlaneseq
          %v543 = vshrl.u32 %v542, 7
          %v544 = vsub.s32 1, %v543
          %v545 = vrot.slane %v324, %v544
          %548 = vmatprep.subr.mxu0 %v327
          %549 = vmatpush1.msra.mxu0 %v326
          %550 = vmatprep.subr.mxu0 %v329
          %551 = vmatpush1.msra.mxu0 %v328
          %552 = vmatprep.subr.mxu0 %v331
          %553 = vmatpush1.msra.mxu0 %v330
          %554 = vmatprep.subr.mxu0 %v333
          %555 = vmatpush1.msra.mxu0 %v332
          %556 = vmatprep.subr.mxu0 %v335
          %557 = vmatpush1.msra.mxu0 %v334
          %558 = vmatprep.subr.mxu0 %v337
          %559 = vmatpush1.msra.mxu0 %v336
          %560 = vmatprep.subr.mxu0 %v339
          %561 = vmatpush1.msra.mxu0 %v338
          %562 = vmatprep.subr.mxu0 %v341
          %563 = vmatpush1.msra.mxu0 %v340
          %564 = vmatprep.subr.mxu0 %v343
          %565 = vmatpush1.msra.mxu0 %v342
          %566 = vmatprep.subr.mxu0 %v345
          %567 = vmatpush1.msra.mxu0 %v344
          %568 = vmatprep.subr.mxu0 %v347
          %569 = vmatpush1.msra.mxu0 %v346
          %570 = vmatprep.subr.mxu0 %v349
          %571 = vmatpush1.msra.mxu0 %v348
          %572 = vmatprep.subr.mxu0 %v351
          %573 = vmatpush1.msra.mxu0 %v350
          %574 = vmatprep.subr.mxu0 %v353
          %575 = vmatpush1.msra.mxu0 %v352
          %576 = vmatprep.subr.mxu0 %v355
          %577 = vmatpush1.msra.mxu0 %v354
          %578 = vmatprep.subr.mxu0 %v357
          %579 = vmatpush1.msra.mxu0 %v356
          %580 = vmatprep.subr.mxu0 %v359
          %581 = vmatpush1.msra.mxu0 %v358
          %582 = vmatprep.subr.mxu0 %v361
          %583 = vmatpush1.msra.mxu0 %v360
          %584 = vmatprep.subr.mxu0 %v363
          %585 = vmatpush1.msra.mxu0 %v362
          %586 = vmatprep.subr.mxu0 %v365
          %587 = vmatpush1.msra.mxu0 %v364
          %588 = vmatprep.subr.mxu0 %v367
          %589 = vmatpush1.msra.mxu0 %v366
          %590 = vmatprep.subr.mxu0 %v369
          %591 = vmatpush1.msra.mxu0 %v368
          %592 = vmatprep.subr.mxu0 %v371
          %593 = vmatpush1.msra.mxu0 %v370
          %594 = vmatprep.subr.mxu0 %v373
          %595 = vmatpush1.msra.mxu0 %v372
          %596 = vmatprep.subr.mxu0 %v375
          %597 = vmatpush1.msra.mxu0 %v374
          %598 = vmatprep.subr.mxu0 %v377
          %599 = vmatpush1.msra.mxu0 %v376
          %600 = vmatprep.subr.mxu0 %v379
          %601 = vmatpush1.msra.mxu0 %v378
          %602 = vmatprep.subr.mxu0 %v381
          %603 = vmatpush1.msra.mxu0 %v380
          %604 = vmatprep.subr.mxu0 %v383
          %605 = vmatpush1.msra.mxu0 %v382
          %606 = vmatprep.subr.mxu0 %v385
          %607 = vmatpush1.msra.mxu0 %v384
          %608 = vmatprep.subr.mxu0 %v387
          %609 = vmatpush1.msra.mxu0 %v386
          %610 = vmatprep.subr.mxu0 %v389
          %611 = vmatpush1.msra.mxu0 %v388
          %612 = vmatprep.mubr.f32.mxu0 %v545
          %613 = vmatmul.mubr.f32.gmra.mrb[0].mxu0 %v541
          %v614 = vpop.f32.mrb[0].mxu0
          %v615 = vadd.f32 %v533, %v614
          %v616 = vpop.f32.mrb[0].mxu0
          %v617 = vadd.f32 %v535, %v616
          %618 = vdwg.mxu0
          %v619 = vmul.f32 %v615, 0.5
          %v620 = vmul.f32 %v617, 0.5
          %v621 = vtanh.pop %v619
          %v622 = vtanh.pop %v620
          %v623 = vadd.f32 %v621, 1.0
          %v624 = vadd.f32 %v622, 1.0
          %v625 = vmul.f32 %v623, 0.5
          %v626 = vmul.f32 %v624, 0.5
          %v629 = vcombine.low %v625, %v626
          %v631 = vunpack.c.l.s4 1966171168
          %v632 = vunpack.c.0.s8 %v631
          %v633 = vlaneseq
          %v634 = vshrl.u32 %v633, 7
          %v635 = vsub.s32 %v632, %v634
          %v636 = vrot.slane %v629, %v635
          %v638 = vunpack.c.l.s4 1966171168
          %v639 = vunpack.c.0.s8 %v638
          %v640 = vlaneseq
          %v641 = vshrl.u32 %v640, 7
          %v642 = vsub.s32 %v639, %v641
          %v643 = vrot.slane %v636, %v642
          %v645 = vlaneseq
          %vm646 = vcmp.ge.s32.totalorder %v645, 0
          %vm647 = vcmp.lt.s32.totalorder %v645, 256
          %vm648 = vmand %vm646, %vm647
          %649 = vst.msk [vmem:[%s190] sm:$0x3] %vm648, %v643
        $region48: #{tpu_custom_call.1} parent=27 // pred_fallthru
          _
        %s650 = sand.u32 %s89, 1
        %s651 = scalar_lea.sflag [#allocation6], %s650
        %s652 = sand.u32 %s89, 1
        %s653 = smul.addr %s652, 2
        %s654 = scalar_lea.vmem [#allocation9], %s653
        // Predicated region
        $region49: #{tpu_custom_call.1} parent=27 // pred_check
          %p655 = pneg %p99
        $region50: #{tpu_custom_call.1} parent=27 // pred_check_branch
          %657 = sbr.rel (%p655) target = $region52
        $region51: #{tpu_custom_call.1} parent=27 // pred_region
          %s659 = ssub.s32 32, 32
          %660 = vsyncadd %s651, %s659
          %s661 = smul.addr %s24, 2
          %s662 = smul.addr %s661, 16
          %s663 = scalar_lea.hbm %s2, %s662
          %s665 = sshll.u32 %s654, 4
          %s666 = int_to_ptr.vmem [resolvable:$true] %s665
          %668 = dma.vmem_to_hbm [thread:$0]  %s666, 32, %s663, %s651
        $region52: #{tpu_custom_call.1} parent=27 // pred_fallthru
          _
      $region28: #{tpu_custom_call.1} parent=5 // pred_fallthru
        _
      %p669 = scmp.le.s32.totalorder 2, %s15
      // Predicated region
      $region53: #{tpu_custom_call.1} parent=5 // pred_check
        %p670 = pneg %p669
      $region54: #{tpu_custom_call.1} parent=5 // pred_check_branch
        %672 = sbr.rel (%p670) target = $region56
      $region55: #{tpu_custom_call.1} parent=5 // pred_region
        %s673 = ssub.s32 %s15, 2
        // Predicated region
        $region57: #{tpu_custom_call.1} parent=55 // pred_check
          %p674 = pneg %p105
        $region58: #{tpu_custom_call.1} parent=55 // pred_check_branch
          %676 = sbr.rel (%p674) target = $region60
        $region59: #{tpu_custom_call.1} parent=55 // pred_region
          %s677 = sand.u32 %s90, 1
          %s678 = scalar_lea.sflag [#allocation6], %s677
          %s679 = sand.u32 %s90, 1
          %s680 = smul.addr %s679, 2
          %s681 = scalar_lea.vmem [#allocation9], %s680
          %682 = dma.done %s678, 32
        $region60: #{tpu_custom_call.1} parent=55 // pred_fallthru
          _
      $region56: #{tpu_custom_call.1} parent=5 // pred_fallthru
        _
    $region6: #{tpu_custom_call.1} parent=1 // loop_footer
      %s19 = sadd.s32 1, %s15
    $region7: #{tpu_custom_call.1} parent=1 // loop_footer_branch
      %14 = sbr.rel target = $region3
    $region8: #{tpu_custom_call.1} parent=1 // loop_exit
      _
    %683 = vsyncpa [#allocation5], 1
    %s684 = scalar_lea.sflag [#allocation5], 1
    %685 = vsyncpa %s684, 1
    %686 = vsyncpa [#allocation8], 1
    %687 = vsyncpa [#allocation6], 1
    %s688 = scalar_lea.sflag [#allocation6], 1
    %689 = vsyncpa %s688, 1

</llo_original>
